<compile_context>
chip_gen: v7x
topology: tpu7x:2x2x1
jax: 0.10.0
libtpu: 0.0.40
codegen_flags: <defaults>
</compile_context>

<pallas_src>
import jax
import jax.numpy as jnp
from jax.experimental import pallas as pl
from jax.experimental.pallas import tpu as pltpu


_N_OUT = 10
_LANE = 128


# --------------------------------------------------------------------------
# Kernel
# --------------------------------------------------------------------------
def _mlp_kernel(x_ref,        # (block_b, image_size)  native dtype (f32)
                w0_ref,       # (image_size, 128)      bf16
                w1_ref,       # (128, 64)              bf16
                w2_ref,       # (64, 10)               f32
                w_tiny_ref,   # (4, 10, 10)            f32   (fc3..fc6)
                b_ref,        # (7, 128)               f32   (zero-padded biases)
                o_ref):       # (block_b, 10)          f32
    # x streams from HBM in its native dtype; cast to bf16 on the VPU (idle
    # here) right before the MXU dot so the dominant HBM stream is read once.
    x = x_ref[...].astype(jnp.bfloat16)

    # --- layer 0: image_size -> 128 (bf16 MXU, f32 accumulate) ---
    h = jnp.dot(x, w0_ref[...], preferred_element_type=jnp.float32)
    h = jnp.maximum(h + b_ref[0:1, :], 0.0)

    # --- layer 1: 128 -> 64 ---
    h = jnp.dot(h.astype(jnp.bfloat16), w1_ref[...],
                preferred_element_type=jnp.float32)
    h = jnp.maximum(h + b_ref[1:2, 0:64], 0.0)

    # --- layer 2: 64 -> 10 ---
    h = jnp.dot(h, w2_ref[...], preferred_element_type=jnp.float32)
    h = jnp.maximum(h + b_ref[2:3, 0:_N_OUT], 0.0)

    # --- layers 3..5 (ReLU) and layer 6 (logits), all 10 -> 10 ---
    z = h
    for li in range(4):
        z = jnp.dot(z, w_tiny_ref[li], preferred_element_type=jnp.float32)
        z = z + b_ref[3 + li:4 + li, 0:_N_OUT]
        if li < 3:
            z = jnp.maximum(z, 0.0)

    # --- numerically stable log_softmax along the class axis ---
    z_max = jnp.max(z, axis=-1, keepdims=True)
    shifted = z - z_max
    lse = jnp.log(jnp.sum(jnp.exp(shifted), axis=-1, keepdims=True))
    o_ref[...] = (shifted - lse).astype(o_ref.dtype)


# --------------------------------------------------------------------------
# Wrapper helpers
# --------------------------------------------------------------------------
def _round_up(v, m):
    return -(-v // m) * m


def _tpu_generation_caps():
    """(vmem_budget_bytes, two_tensorcores) per TPU generation.

    v7x has 64 MiB VMEM per TensorCore and 2 TCs/chip -> conservative budget,
    keep >= 2 grid steps.  v4/v5/v6 are 128 MiB parts -> large budget.
    Unknown hardware falls back to the conservative setting.
    """
    kind = ""
    try:
        kind = jax.devices()[0].device_kind.lower()
    except Exception:
        pass
    if "v7" in kind:
        return 44 * 2**20, True
    if any(g in kind for g in ("v4", "v5", "v6")):
        single_tc = ("lite" in kind) or ("v5e" in kind) or ("v6e" in kind)
        return 80 * 2**20, (not single_tc)
    return 44 * 2**20, True


def _weight_vmem_bytes(image_size):
    """Resident parameter VMEM, counting Pallas' default 2x double-buffering
    and lane/sublane padding of the small tiles."""
    return 2 * (image_size * _LANE * 2       # w0 bf16
                + _LANE * 64 * 2             # w1 bf16
                + 64 * _LANE * 4             # w2 f32 (10 -> 128 lane pad)
                + 4 * 16 * _LANE * 4         # fc3..fc6 packed, (10,10)->(16,128) pad
                + 8 * _LANE * 4)             # biases (7,128) -> (8,128) pad


def _pick_block_b(B, image_size, x_itemsize, vmem_budget, requested=None,
                  two_tc=False):
    """Largest batch tile that fits the VMEM budget (double-buffered x/out +
    resident double-buffered weights + activations), multiple of 16."""
    if requested is not None:
        return max(8, _round_up(int(requested), 8))
    per_row = (2 * image_size * x_itemsize   # x tile (native dtype), double-buffered
               + 2 * _LANE * 4               # out tile (lane-padded bound), double-buffered
               + 3 * _LANE * 4)              # intermediate activations (generous)
    avail = int(vmem_budget * 0.9) - _weight_vmem_bytes(image_size)
    bb = max(16, avail // per_row)
    bb = min(bb, 8192)                       # per-step overhead negligible at this size
    bb = min(bb, _round_up(B, 16))           # never exceed the (rounded-up) batch
    if two_tc and B >= 32:
        # keep >= 2 grid steps so the "parallel" axis shards over both TCs
        bb = min(bb, _round_up(pl.cdiv(B, 2), 16))
    return max(16, (int(bb) // 16) * 16)


def prepare_params(params):
    """Pack per-layer (W:(in,out), b:(out,)) params for the kernel.

    Returns (w0_bf16, w1_bf16, w2_f32, w_tiny_(4,10,10)_f32, b_pack_(7,128)_f32).
    """
    (w0, b0), (w1, b1), (w2, b2), (w3, b3), (w4, b4), (w5, b5), (w6, b6) = params

    w0p = w0.astype(jnp.bfloat16)
    w1p = w1.astype(jnp.bfloat16)
    w2p = w2.astype(jnp.float32)
    w_tiny = jnp.stack([w3, w4, w5, w6]).astype(jnp.float32)          # (4, 10, 10)

    b_pack = jnp.zeros((7, _LANE), jnp.float32)
    for i, b in enumerate([b0, b1, b2, b3, b4, b5, b6]):
        b = b.reshape(-1).astype(jnp.float32)
        b_pack = b_pack.at[i, :b.shape[0]].set(b)
    return w0p, w1p, w2p, w_tiny, b_pack


def model_d_forward(x, packed_params, *, image_size, block_b=None):
    """x: any shape with total elements divisible by image_size.

    packed_params: output of prepare_params(). Returns (B, 10) f32 log-probs.
    """
    w0p, w1p, w2p, w_tiny, b_pack = packed_params

    # No dtype cast, no padding pass over x in the wrapper: the kernel reads x
    # in its native dtype; the ragged final block is handled by Pallas
    # partial-block clipping (reads/writes outside [0, B) are masked).
    x2 = x.reshape(-1, image_size)
    B = x2.shape[0]

    budget, two_tc = _tpu_generation_caps()
    bb = _pick_block_b(B, image_size, x2.dtype.itemsize, budget, block_b, two_tc)
    n_blocks = pl.cdiv(B, bb)

    in_specs = [
        pl.BlockSpec((bb, image_size), lambda i: (i, 0)),            # x (tiled on batch)
        pl.BlockSpec(w0p.shape, lambda i: (0, 0)),                   # w0 (resident)
        pl.BlockSpec(w1p.shape, lambda i: (0, 0)),                   # w1
        pl.BlockSpec(w2p.shape, lambda i: (0, 0)),                   # w2
        pl.BlockSpec(w_tiny.shape, lambda i: (0, 0, 0)),             # fc3..fc6 packed
        pl.BlockSpec(b_pack.shape, lambda i: (0, 0)),                # all biases packed
    ]
    out_spec = pl.BlockSpec((bb, _N_OUT), lambda i: (i, 0))

    return pl.pallas_call(
        _mlp_kernel,
        out_shape=jax.ShapeDtypeStruct((B, _N_OUT), jnp.float32),
        grid_spec=pltpu.PrefetchScalarGridSpec(
            num_scalar_prefetch=0,
            grid=(n_blocks,),
            in_specs=in_specs,
            out_specs=out_spec,
        ),
        compiler_params=pltpu.CompilerParams(
            dimension_semantics=("parallel",),
            vmem_limit_bytes=int(budget),
        ),
    )(x2, w0p, w1p, w2p, w_tiny, b_pack)


# --------------------------------------------------------------------------
# Init + references
# --------------------------------------------------------------------------
def init_params(image_size, key):
    """Mirrors ModelD's layer shapes. PyTorch Linear(in,out) stores weight
    (out,in); we store the transpose (in,out) plus bias (out,)."""
    dims = [image_size, 128, 64, 10, 10, 10, 10, 10]
    params = []
    for li in range(len(dims) - 1):
        d_in, d_out = dims[li], dims[li + 1]
        key, kw, kb = jax.random.split(key, 3)
        bound = 1.0 / jnp.sqrt(jnp.float32(d_in))
        w = jax.random.uniform(kw, (d_in, d_out), jnp.float32, -bound, bound)
        b = jax.random.uniform(kb, (d_out,), jnp.float32, -bound, bound)
        params.append((w, b))
    return params


def reference_forward_f32(x, params, image_size):
    """Pure f32 reference (matches the PyTorch module semantics)."""
    h = x.reshape(-1, image_size).astype(jnp.float32)
    for (w, b) in params[:-1]:
        h = jnp.maximum(h @ w + b[None, :], 0.0)
    z = h @ params[-1][0] + params[-1][1][None, :]
    return jax.nn.log_softmax(z, axis=-1)


def reference_forward_matched(x, params, image_size):
    """Reference with the same bf16 casts the kernel applies (x, W0, W1)."""
    h = x.reshape(-1, image_size).astype(jnp.bfloat16)
    (w0, b0), (w1, b1) = params[0], params[1]
    h = jnp.maximum(
        jnp.dot(h, w0.astype(jnp.bfloat16), preferred_element_type=jnp.float32)
        + b0[None, :], 0.0)
    h = jnp.maximum(
        jnp.dot(h.astype(jnp.bfloat16), w1.astype(jnp.bfloat16),
                preferred_element_type=jnp.float32) + b1[None, :], 0.0)
    for (w, b) in params[2:-1]:
        h = jnp.maximum(h @ w + b[None, :], 0.0)
    z = h @ params[-1][0] + params[-1][1][None, :]
    return jax.nn.log_softmax(z, axis=-1)


# --------------------------------------------------------------------------
# Self-test
# --------------------------------------------------------------------------
if __name__ == "__main__":
    image_size = 64            # flattened 8x8 "image"
    key = jax.random.PRNGKey(0)
    params = init_params(image_size, key)
    packed = prepare_params(params)

    # Case 1: small batch, single (partial) grid block.
    key, kx = jax.random.split(key)
    x = jax.random.normal(kx, (8, 1, 8, 8), dtype=jnp.float32)
    out = jax.block_until_ready(
        model_d_forward(x, packed, image_size=image_size))
    assert out.shape == (8, 10)
    ref_m = reference_forward_matched(x, params, image_size)
    ref_f = reference_forward_f32(x, params, image_size)
    assert jnp.allclose(out, ref_m, atol=1e-3, rtol=1e-3), "mismatch (matched ref)"
    assert jnp.allclose(out, ref_f, atol=5e-2, rtol=5e-2), "mismatch (f32 ref)"
    assert jnp.allclose(jnp.sum(jnp.exp(out), axis=-1), 1.0, atol=1e-3)

    # Case 2: ragged batch + multi-step grid (partial final block, pipelining).
    key, kx2 = jax.random.split(key)
    x2 = jax.random.normal(kx2, (50, 1, 8, 8), dtype=jnp.float32)
    out2 = jax.block_until_ready(
        model_d_forward(x2, packed, image_size=image_size, block_b=16))
    assert out2.shape == (50, 10)
    ref2 = reference_forward_matched(x2, params, image_size)
    assert jnp.allclose(out2, ref2, atol=1e-3, rtol=1e-3), "mismatch (ragged batch)"
    assert jnp.allclose(jnp.sum(jnp.exp(out2), axis=-1), 1.0, atol=1e-3)

    print("KERNEL_OK")
</pallas_src>

<mosaic_0001>
module attributes {stable_mosaic.version = 11 : i64} {
  func.func @_mlp_kernel(%arg0: i32, %arg1: memref<16x64xf32, #tpu.memory_space<vmem>>, %arg2: memref<64x128xbf16, #tpu.memory_space<vmem>>, %arg3: memref<128x64xbf16, #tpu.memory_space<vmem>>, %arg4: memref<64x10xf32, #tpu.memory_space<vmem>>, %arg5: memref<4x10x10xf32, #tpu.memory_space<vmem>>, %arg6: memref<7x128xf32, #tpu.memory_space<vmem>>, %arg7: memref<16x10xf32, #tpu.memory_space<vmem>>) attributes {dimension_semantics = [#tpu.dimension_semantics<parallel>], iteration_bounds = array<i64: 1>, scalar_prefetch = 0 : i64, scratch_operands = 0 : i64, tpu.core_type = #tpu.core_type<tc>, window_params = [{transform_indices = @transform_0, window_bounds = array<i64: 16, 64>}, {pipeline_mode = #tpu.pipeline_mode<synchronous>, transform_indices = @transform_1, window_bounds = array<i64: 64, 128>}, {pipeline_mode = #tpu.pipeline_mode<synchronous>, transform_indices = @transform_2, window_bounds = array<i64: 128, 64>}, {pipeline_mode = #tpu.pipeline_mode<synchronous>, transform_indices = @transform_3, window_bounds = array<i64: 64, 10>}, {pipeline_mode = #tpu.pipeline_mode<synchronous>, transform_indices = @transform_4, window_bounds = array<i64: 4, 10, 10>}, {pipeline_mode = #tpu.pipeline_mode<synchronous>, transform_indices = @transform_5, window_bounds = array<i64: 7, 128>}, {transform_indices = @transform_6, window_bounds = array<i64: 16, 10>}]} {
    %c0 = arith.constant 0 : index
    %c0_0 = arith.constant 0 : index
    %0 = vector.load %arg1[%c0, %c0_0] : memref<16x64xf32, #tpu.memory_space<vmem>>, vector<16x64xf32>
    %1 = arith.truncf %0 : vector<16x64xf32> to vector<16x64xbf16>
    %c0_1 = arith.constant 0 : index
    %c0_2 = arith.constant 0 : index
    %2 = vector.load %arg2[%c0_1, %c0_2] : memref<64x128xbf16, #tpu.memory_space<vmem>>, vector<64x128xbf16>
    %cst = arith.constant dense<0.000000e+00> : vector<16x128xf32>
    %3 = tpu.matmul %1, %2, %cst {dimension_numbers = #tpu.dot_dimension_numbers<[1], [0], [0], [1], [0, 0, 1, 1], [], []>} : vector<16x64xbf16>, vector<64x128xbf16>, vector<16x128xf32> -> vector<16x128xf32>
    %c0_3 = arith.constant 0 : index
    %c0_4 = arith.constant 0 : index
    %4 = vector.load %arg6[%c0_3, %c0_4] : memref<7x128xf32, #tpu.memory_space<vmem>>, vector<1x128xf32>
    %5 = vector.broadcast %4 : vector<1x128xf32> to vector<16x128xf32>
    %6 = arith.addf %3, %5 : vector<16x128xf32>
    %cst_5 = arith.constant 0.000000e+00 : f32
    %7 = vector.broadcast %cst_5 : f32 to vector<16x128xf32>
    %8 = arith.maximumf %6, %7 : vector<16x128xf32>
    %9 = arith.truncf %8 : vector<16x128xf32> to vector<16x128xbf16>
    %c0_6 = arith.constant 0 : index
    %c0_7 = arith.constant 0 : index
    %10 = vector.load %arg3[%c0_6, %c0_7] : memref<128x64xbf16, #tpu.memory_space<vmem>>, vector<128x64xbf16>
    %cst_8 = arith.constant dense<0.000000e+00> : vector<16x64xf32>
    %11 = tpu.matmul %9, %10, %cst_8 {dimension_numbers = #tpu.dot_dimension_numbers<[1], [0], [0], [1], [0, 0, 1, 1], [], []>} : vector<16x128xbf16>, vector<128x64xbf16>, vector<16x64xf32> -> vector<16x64xf32>
    %c1 = arith.constant 1 : index
    %c0_9 = arith.constant 0 : index
    %12 = vector.load %arg6[%c1, %c0_9] : memref<7x128xf32, #tpu.memory_space<vmem>>, vector<1x64xf32>
    %13 = vector.broadcast %12 : vector<1x64xf32> to vector<16x64xf32>
    %14 = arith.addf %11, %13 : vector<16x64xf32>
    %cst_10 = arith.constant 0.000000e+00 : f32
    %15 = vector.broadcast %cst_10 : f32 to vector<16x64xf32>
    %16 = arith.maximumf %14, %15 : vector<16x64xf32>
    %c0_11 = arith.constant 0 : index
    %c0_12 = arith.constant 0 : index
    %17 = vector.load %arg4[%c0_11, %c0_12] : memref<64x10xf32, #tpu.memory_space<vmem>>, vector<64x10xf32>
    %cst_13 = arith.constant dense<0.000000e+00> : vector<16x10xf32>
    %18 = tpu.matmul %16, %17, %cst_13 {dimension_numbers = #tpu.dot_dimension_numbers<[1], [0], [0], [1], [0, 0, 1, 1], [], []>} : vector<16x64xf32>, vector<64x10xf32>, vector<16x10xf32> -> vector<16x10xf32>
    %c2 = arith.constant 2 : index
    %c0_14 = arith.constant 0 : index
    %19 = vector.load %arg6[%c2, %c0_14] : memref<7x128xf32, #tpu.memory_space<vmem>>, vector<1x10xf32>
    %20 = vector.broadcast %19 : vector<1x10xf32> to vector<16x10xf32>
    %21 = arith.addf %18, %20 : vector<16x10xf32>
    %cst_15 = arith.constant 0.000000e+00 : f32
    %22 = vector.broadcast %cst_15 : f32 to vector<16x10xf32>
    %23 = arith.maximumf %21, %22 : vector<16x10xf32>
    %c0_16 = arith.constant 0 : index
    %c0_17 = arith.constant 0 : index
    %c0_18 = arith.constant 0 : index
    %24 = vector.load %arg5[%c0_16, %c0_17, %c0_18] : memref<4x10x10xf32, #tpu.memory_space<vmem>>, vector<1x10x10xf32>
    %25 = vector.shape_cast %24 : vector<1x10x10xf32> to vector<10x10xf32>
    %cst_19 = arith.constant dense<0.000000e+00> : vector<16x10xf32>
    %26 = tpu.matmul %23, %25, %cst_19 {dimension_numbers = #tpu.dot_dimension_numbers<[1], [0], [0], [1], [0, 0, 1, 1], [], []>} : vector<16x10xf32>, vector<10x10xf32>, vector<16x10xf32> -> vector<16x10xf32>
    %c3 = arith.constant 3 : index
    %c0_20 = arith.constant 0 : index
    %27 = vector.load %arg6[%c3, %c0_20] : memref<7x128xf32, #tpu.memory_space<vmem>>, vector<1x10xf32>
    %28 = vector.broadcast %27 : vector<1x10xf32> to vector<16x10xf32>
    %29 = arith.addf %26, %28 : vector<16x10xf32>
    %cst_21 = arith.constant 0.000000e+00 : f32
    %30 = vector.broadcast %cst_21 : f32 to vector<16x10xf32>
    %31 = arith.maximumf %29, %30 : vector<16x10xf32>
    %c1_22 = arith.constant 1 : index
    %c0_23 = arith.constant 0 : index
    %c0_24 = arith.constant 0 : index
    %32 = vector.load %arg5[%c1_22, %c0_23, %c0_24] : memref<4x10x10xf32, #tpu.memory_space<vmem>>, vector<1x10x10xf32>
    %33 = vector.shape_cast %32 : vector<1x10x10xf32> to vector<10x10xf32>
    %cst_25 = arith.constant dense<0.000000e+00> : vector<16x10xf32>
    %34 = tpu.matmul %31, %33, %cst_25 {dimension_numbers = #tpu.dot_dimension_numbers<[1], [0], [0], [1], [0, 0, 1, 1], [], []>} : vector<16x10xf32>, vector<10x10xf32>, vector<16x10xf32> -> vector<16x10xf32>
    %c4 = arith.constant 4 : index
    %c0_26 = arith.constant 0 : index
    %35 = vector.load %arg6[%c4, %c0_26] : memref<7x128xf32, #tpu.memory_space<vmem>>, vector<1x10xf32>
    %36 = vector.broadcast %35 : vector<1x10xf32> to vector<16x10xf32>
    %37 = arith.addf %34, %36 : vector<16x10xf32>
    %cst_27 = arith.constant 0.000000e+00 : f32
    %38 = vector.broadcast %cst_27 : f32 to vector<16x10xf32>
    %39 = arith.maximumf %37, %38 : vector<16x10xf32>
    %c2_28 = arith.constant 2 : index
    %c0_29 = arith.constant 0 : index
    %c0_30 = arith.constant 0 : index
    %40 = vector.load %arg5[%c2_28, %c0_29, %c0_30] : memref<4x10x10xf32, #tpu.memory_space<vmem>>, vector<1x10x10xf32>
    %41 = vector.shape_cast %40 : vector<1x10x10xf32> to vector<10x10xf32>
    %cst_31 = arith.constant dense<0.000000e+00> : vector<16x10xf32>
    %42 = tpu.matmul %39, %41, %cst_31 {dimension_numbers = #tpu.dot_dimension_numbers<[1], [0], [0], [1], [0, 0, 1, 1], [], []>} : vector<16x10xf32>, vector<10x10xf32>, vector<16x10xf32> -> vector<16x10xf32>
    %c5 = arith.constant 5 : index
    %c0_32 = arith.constant 0 : index
    %43 = vector.load %arg6[%c5, %c0_32] : memref<7x128xf32, #tpu.memory_space<vmem>>, vector<1x10xf32>
    %44 = vector.broadcast %43 : vector<1x10xf32> to vector<16x10xf32>
    %45 = arith.addf %42, %44 : vector<16x10xf32>
    %cst_33 = arith.constant 0.000000e+00 : f32
    %46 = vector.broadcast %cst_33 : f32 to vector<16x10xf32>
    %47 = arith.maximumf %45, %46 : vector<16x10xf32>
    %c3_34 = arith.constant 3 : index
    %c0_35 = arith.constant 0 : index
    %c0_36 = arith.constant 0 : index
    %48 = vector.load %arg5[%c3_34, %c0_35, %c0_36] : memref<4x10x10xf32, #tpu.memory_space<vmem>>, vector<1x10x10xf32>
    %49 = vector.shape_cast %48 : vector<1x10x10xf32> to vector<10x10xf32>
    %cst_37 = arith.constant dense<0.000000e+00> : vector<16x10xf32>
    %50 = tpu.matmul %47, %49, %cst_37 {dimension_numbers = #tpu.dot_dimension_numbers<[1], [0], [0], [1], [0, 0, 1, 1], [], []>} : vector<16x10xf32>, vector<10x10xf32>, vector<16x10xf32> -> vector<16x10xf32>
    %c6 = arith.constant 6 : index
    %c0_38 = arith.constant 0 : index
    %51 = vector.load %arg6[%c6, %c0_38] : memref<7x128xf32, #tpu.memory_space<vmem>>, vector<1x10xf32>
    %52 = vector.broadcast %51 : vector<1x10xf32> to vector<16x10xf32>
    %53 = arith.addf %50, %52 : vector<16x10xf32>
    %cst_39 = arith.constant dense<0xFF800000> : vector<16xf32>
    %54 = vector.multi_reduction <maximumf>, %53, %cst_39 [1] : vector<16x10xf32> to vector<16xf32>
    %55 = vector.shape_cast %54 : vector<16xf32> to vector<16x1xf32>
    %56 = vector.broadcast %55 : vector<16x1xf32> to vector<16x10xf32>
    %57 = arith.subf %53, %56 : vector<16x10xf32>
    %58 = math.exp %57 : vector<16x10xf32>
    %cst_40 = arith.constant dense<0.000000e+00> : vector<16xf32>
    %59 = vector.multi_reduction <add>, %58, %cst_40 [1] : vector<16x10xf32> to vector<16xf32>
    %60 = vector.shape_cast %59 : vector<16xf32> to vector<16x1xf32>
    %61 = math.log %60 : vector<16x1xf32>
    %62 = vector.broadcast %61 : vector<16x1xf32> to vector<16x10xf32>
    %63 = arith.subf %57, %62 : vector<16x10xf32>
    %c0_41 = arith.constant 0 : index
    %c0_42 = arith.constant 0 : index
    %64 = vector.load %arg7[%c0_41, %c0_42] : memref<16x10xf32, #tpu.memory_space<vmem>>, vector<16x10xf32>
    tpu.vector_store %arg7[%c0_41, %c0_42], %63 {strides = array<i32>} : memref<16x10xf32, #tpu.memory_space<vmem>>, vector<16x10xf32>,
    return
  }
  func.func @transform_0(%arg0: i32) -> (i32, i32) {
    %c0_i32 = arith.constant 0 : i32
    %c0_i32_0 = arith.constant 0 : i32
    return %arg0, %c0_i32 : i32, i32
  }
  func.func @transform_1(%arg0: i32) -> (i32, i32) {
    %c0_i32 = arith.constant 0 : i32
    %c0_i32_0 = arith.constant 0 : i32
    %c0_i32_1 = arith.constant 0 : i32
    return %c0_i32, %c0_i32_0 : i32, i32
  }
  func.func @transform_2(%arg0: i32) -> (i32, i32) {
    %c0_i32 = arith.constant 0 : i32
    %c0_i32_0 = arith.constant 0 : i32
    %c0_i32_1 = arith.constant 0 : i32
    return %c0_i32, %c0_i32_0 : i32, i32
  }
  func.func @transform_3(%arg0: i32) -> (i32, i32) {
    %c0_i32 = arith.constant 0 : i32
    %c0_i32_0 = arith.constant 0 : i32
    %c0_i32_1 = arith.constant 0 : i32
    return %c0_i32, %c0_i32_0 : i32, i32
  }
  func.func @transform_4(%arg0: i32) -> (i32, i32, i32) {
    %c0_i32 = arith.constant 0 : i32
    %c0_i32_0 = arith.constant 0 : i32
    %c0_i32_1 = arith.constant 0 : i32
    %c0_i32_2 = arith.constant 0 : i32
    return %c0_i32, %c0_i32_0, %c0_i32_1 : i32, i32, i32
  }
  func.func @transform_5(%arg0: i32) -> (i32, i32) {
    %c0_i32 = arith.constant 0 : i32
    %c0_i32_0 = arith.constant 0 : i32
    %c0_i32_1 = arith.constant 0 : i32
    return %c0_i32, %c0_i32_0 : i32, i32
  }
  func.func @transform_6(%arg0: i32) -> (i32, i32) {
    %c0_i32 = arith.constant 0 : i32
    %c0_i32_0 = arith.constant 0 : i32
    return %arg0, %c0_i32 : i32, i32
  }
}

</mosaic_0001>

<llo_original>
// kernel: tpu_custom_call.1
$region0: #{tpu_custom_call.1}
  #allocation0 [shape = 'u32[]', space=smem, size = 0x4, offset = 0x4, fixed_abs, tag = 'smem constant byte address 0x4 - core index']
  #allocation1 [shape = 'u32[144,128]{1,0:T(1,128)}', space=vmem, size = 0x12000, scoped, tag = 'internal scratch']
  %s0 = inlined_call_operand.vmem [shape: f32[8,64], index: 0, kind: input, shape index: {}]
  %s1 = inlined_call_operand.vmem [shape: bf16[64,128], index: 1, kind: input, shape index: {}]
  %s2 = inlined_call_operand.vmem [shape: bf16[128,64], index: 2, kind: input, shape index: {}]
  %s3 = inlined_call_operand.vmem [shape: f32[64,10], index: 3, kind: input, shape index: {}]
  %s4 = inlined_call_operand.vmem [shape: f32[4,10,10], index: 4, kind: input, shape index: {}]
  %s5 = inlined_call_operand.vmem [shape: f32[7,128], index: 5, kind: input, shape index: {}]
  %s6 = inlined_call_operand.hbm [shape: f32[8,10], index: 6, kind: output, shape index: {}]
  %s7 = sld [smem:[#allocation0]]
  $region34: #{tpu_custom_call.1} parent=0
    _
  %s9 = ssub.s32 1, %s7
  %s10 = scalar_select 0, %s9, %s7
  $region1: #{tpu_custom_call.1} parent=0
    #allocation2 [shape = 'u8[8192]{0}', space=vmem, size = 0x2000, scoped, tag = 'output window, operand 0, single buffered']
    #allocation3 [shape = 's32[1]{0}', space=sflag, size = 0x4, scoped, tag = 'scoped memory for tpu_custom_call.1']
    %11 = vsyncpa [#allocation3], 0
    // Predicated region
    $region2: #{tpu_custom_call.1} parent=1 // pred_check
      _
    $region3: #{tpu_custom_call.1} parent=1 // pred_check_branch
      %13 = sbr.rel (0) target = $region5
    $region4: #{tpu_custom_call.1} parent=1 // pred_region
      _
    $region5: #{tpu_custom_call.1} parent=1 // pred_fallthru
      _
    // Predicated region
    $region6: #{tpu_custom_call.1} parent=1 // pred_check
      _
    $region7: #{tpu_custom_call.1} parent=1 // pred_check_branch
      %15 = sbr.rel (0) target = $region9
    $region8: #{tpu_custom_call.1} parent=1 // pred_region
      _
    $region9: #{tpu_custom_call.1} parent=1 // pred_fallthru
      _
    // Predicated region
    $region10: #{tpu_custom_call.1} parent=1 // pred_check
      _
    $region11: #{tpu_custom_call.1} parent=1 // pred_check_branch
      %17 = sbr.rel (0) target = $region13
    $region12: #{tpu_custom_call.1} parent=1 // pred_region
      _
    $region13: #{tpu_custom_call.1} parent=1 // pred_fallthru
      _
    // Predicated region
    $region14: #{tpu_custom_call.1} parent=1 // pred_check
      _
    $region15: #{tpu_custom_call.1} parent=1 // pred_check_branch
      %19 = sbr.rel (0) target = $region17
    $region16: #{tpu_custom_call.1} parent=1 // pred_region
      _
    $region17: #{tpu_custom_call.1} parent=1 // pred_fallthru
      _
    // Predicated region
    $region18: #{tpu_custom_call.1} parent=1 // pred_check
      _
    $region19: #{tpu_custom_call.1} parent=1 // pred_check_branch
      %21 = sbr.rel (0) target = $region21
    $region20: #{tpu_custom_call.1} parent=1 // pred_region
      _
    $region21: #{tpu_custom_call.1} parent=1 // pred_fallthru
      _
    // Predicated region
    $region22: #{tpu_custom_call.1} parent=1 // pred_check
      _
    $region23: #{tpu_custom_call.1} parent=1 // pred_check_branch
      %23 = sbr.rel (0) target = $region25
    $region24: #{tpu_custom_call.1} parent=1 // pred_region
      _
    $region25: #{tpu_custom_call.1} parent=1 // pred_fallthru
      _
    %v25 = vld [vmem:[%s0] sm:$0xff]
    %v26 = vld [vmem:[%s0 + $0x8] sm:$0xff]
    %v27 = vpack.c.bf16 %v26, %v25
    %v28 = vld [vmem:[%s1] sm:$0xf]
    %v29 = vld [vmem:[%s1 + $0x4] sm:$0xf]
    %v30 = vld [vmem:[%s1 + $0x8] sm:$0xf]
    %v31 = vld [vmem:[%s1 + $0xc] sm:$0xf]
    %v32 = vld [vmem:[%s1 + $0x10] sm:$0xf]
    %v33 = vld [vmem:[%s1 + $0x14] sm:$0xf]
    %v34 = vld [vmem:[%s1 + $0x18] sm:$0xf]
    %v35 = vld [vmem:[%s1 + $0x1c] sm:$0xf]
    %v36 = vld [vmem:[%s5] sm:$0x1]
    %v37 = vlaneseq
    %v38 = vshrl.u32 %v37, 7
    %v39 = vsub.s32 0, %v38
    %v40 = vrot.slane %v36, %v39
    %v49 = vunpack.c.l.b16 %v28
    %v50 = vunpack.c.l.b16 %v29
    %v51 = vunpack.c.l.b16 %v30
    %v52 = vunpack.c.l.b16 %v31
    %v53 = vunpack.c.l.b16 %v32
    %v54 = vunpack.c.l.b16 %v33
    %v55 = vunpack.c.l.b16 %v34
    %v56 = vunpack.c.l.b16 %v35
    %v57 = vpack.c.b16 %v50, %v49
    %v58 = vpack.c.b16 %v52, %v51
    %v59 = vpack.c.b16 %v54, %v53
    %v60 = vpack.c.b16 %v56, %v55
    %vm65 = vcmask 523264
    %v67 = vsel %vm65, %v27, 0
    %69 = vmatprep.subr.bf16.mxu0 0
    %70 = vmatpush1.bf16.msra.mxu0 %v57
    %71 = vmatprep.subr.bf16.mxu0 0
    %72 = vmatpush1.bf16.msra.mxu0 %v58
    %73 = vmatprep.subr.bf16.mxu0 0
    %74 = vmatpush1.bf16.msra.mxu0 %v59
    %75 = vmatprep.subr.bf16.mxu0 0
    %76 = vmatpush1.bf16.msra.mxu0 %v60
    %77 = vmatprep.subr.bf16.mxu0 0
    %78 = vmatpush1.bf16.msra.mxu0 0
    %79 = vmatprep.subr.bf16.mxu0 0
    %80 = vmatpush1.bf16.msra.mxu0 0
    %81 = vmatprep.subr.bf16.mxu0 0
    %82 = vmatpush1.bf16.msra.mxu0 0
    %83 = vmatprep.subr.bf16.mxu0 0
    %84 = vmatpush1.bf16.msra.mxu0 0
    %85 = vmatprep.subr.bf16.mxu0 0
    %86 = vmatpush1.bf16.msra.mxu0 0
    %87 = vmatprep.subr.bf16.mxu0 0
    %88 = vmatpush1.bf16.msra.mxu0 0
    %89 = vmatprep.subr.bf16.mxu0 0
    %90 = vmatpush1.bf16.msra.mxu0 0
    %91 = vmatprep.subr.bf16.mxu0 0
    %92 = vmatpush1.bf16.msra.mxu0 0
    %93 = vmatprep.subr.bf16.mxu0 0
    %94 = vmatpush1.bf16.msra.mxu0 0
    %95 = vmatprep.subr.bf16.mxu0 0
    %96 = vmatpush1.bf16.msra.mxu0 0
    %97 = vmatprep.subr.bf16.mxu0 0
    %98 = vmatpush1.bf16.msra.mxu0 0
    %99 = vmatprep.subr.bf16.mxu0 0
    %100 = vmatpush1.bf16.msra.mxu0 0
    %101 = vmatprep.mubr.bf16.mxu0 0
    %102 = vmatmul.mubr.bf16.gmra.mrb[0].mxu0 %v67
    %v103 = vpop.f32.mrb[0].mxu0
    %v104 = vadd.f32 %v40, %v103
    %v105 = vpop.f32.mrb[0].mxu0
    %v106 = vpop.f32.mrb[0].mxu0
    %v107 = vadd.f32 %v40, %v106
    %v108 = vpop.f32.mrb[0].mxu0
    %109 = vdwg.mxu0
    %v110 = vmax.f32 %v104, 0.0
    %v111 = vmax.f32 %v107, 0.0
    %v112 = vpack.c.bf16 %v111, %v110
    %v113 = vld [vmem:[%s2] sm:$0xf]
    %v114 = vld [vmem:[%s2 + $0x4] sm:$0xf]
    %v115 = vld [vmem:[%s2 + $0x8] sm:$0xf]
    %v116 = vld [vmem:[%s2 + $0xc] sm:$0xf]
    %v117 = vld [vmem:[%s2 + $0x10] sm:$0xf]
    %v118 = vld [vmem:[%s2 + $0x14] sm:$0xf]
    %v119 = vld [vmem:[%s2 + $0x18] sm:$0xf]
    %v120 = vld [vmem:[%s2 + $0x1c] sm:$0xf]
    %v121 = vld [vmem:[%s2 + $0x20] sm:$0xf]
    %v122 = vld [vmem:[%s2 + $0x24] sm:$0xf]
    %v123 = vld [vmem:[%s2 + $0x28] sm:$0xf]
    %v124 = vld [vmem:[%s2 + $0x2c] sm:$0xf]
    %v125 = vld [vmem:[%s2 + $0x30] sm:$0xf]
    %v126 = vld [vmem:[%s2 + $0x34] sm:$0xf]
    %v127 = vld [vmem:[%s2 + $0x38] sm:$0xf]
    %v128 = vld [vmem:[%s2 + $0x3c] sm:$0xf]
    %v129 = vld [vmem:[%s5 + $0x1] sm:$0x1]
    %v130 = vlaneseq
    %v131 = vshrl.u32 %v130, 7
    %v132 = vsub.s32 0, %v131
    %v133 = vrot.slane %v129, %v132
    %v150 = vunpack.c.l.b16 %v113
    %v151 = vunpack.c.l.b16 %v114
    %v152 = vunpack.c.l.b16 %v115
    %v153 = vunpack.c.l.b16 %v116
    %v154 = vunpack.c.l.b16 %v117
    %v155 = vunpack.c.l.b16 %v118
    %v156 = vunpack.c.l.b16 %v119
    %v157 = vunpack.c.l.b16 %v120
    %v158 = vunpack.c.l.b16 %v121
    %v159 = vunpack.c.l.b16 %v122
    %v160 = vunpack.c.l.b16 %v123
    %v161 = vunpack.c.l.b16 %v124
    %v162 = vunpack.c.l.b16 %v125
    %v163 = vunpack.c.l.b16 %v126
    %v164 = vunpack.c.l.b16 %v127
    %v165 = vunpack.c.l.b16 %v128
    %v166 = vpack.c.b16 %v151, %v150
    %v167 = vpack.c.b16 %v153, %v152
    %v168 = vpack.c.b16 %v155, %v154
    %v169 = vpack.c.b16 %v157, %v156
    %v170 = vpack.c.b16 %v159, %v158
    %v171 = vpack.c.b16 %v161, %v160
    %v172 = vpack.c.b16 %v163, %v162
    %v173 = vpack.c.b16 %v165, %v164
    %182 = vmatprep.subr.bf16.mxu0 0
    %183 = vmatpush1.bf16.msra.mxu0 %v166
    %184 = vmatprep.subr.bf16.mxu0 0
    %185 = vmatpush1.bf16.msra.mxu0 %v167
    %186 = vmatprep.subr.bf16.mxu0 0
    %187 = vmatpush1.bf16.msra.mxu0 %v168
    %188 = vmatprep.subr.bf16.mxu0 0
    %189 = vmatpush1.bf16.msra.mxu0 %v169
    %190 = vmatprep.subr.bf16.mxu0 0
    %191 = vmatpush1.bf16.msra.mxu0 %v170
    %192 = vmatprep.subr.bf16.mxu0 0
    %193 = vmatpush1.bf16.msra.mxu0 %v171
    %194 = vmatprep.subr.bf16.mxu0 0
    %195 = vmatpush1.bf16.msra.mxu0 %v172
    %196 = vmatprep.subr.bf16.mxu0 0
    %197 = vmatpush1.bf16.msra.mxu0 %v173
    %198 = vmatprep.subr.bf16.mxu0 0
    %199 = vmatpush1.bf16.msra.mxu0 0
    %200 = vmatprep.subr.bf16.mxu0 0
    %201 = vmatpush1.bf16.msra.mxu0 0
    %202 = vmatprep.subr.bf16.mxu0 0
    %203 = vmatpush1.bf16.msra.mxu0 0
    %204 = vmatprep.subr.bf16.mxu0 0
    %205 = vmatpush1.bf16.msra.mxu0 0
    %206 = vmatprep.subr.bf16.mxu0 0
    %207 = vmatpush1.bf16.msra.mxu0 0
    %208 = vmatprep.subr.bf16.mxu0 0
    %209 = vmatpush1.bf16.msra.mxu0 0
    %210 = vmatprep.subr.bf16.mxu0 0
    %211 = vmatpush1.bf16.msra.mxu0 0
    %212 = vmatprep.subr.bf16.mxu0 0
    %213 = vmatpush1.bf16.msra.mxu0 0
    %214 = vmatprep.mubr.bf16.mxu0 0
    %215 = vmatmul.mubr.bf16.gmra.mrb[0].mxu0 %v112
    %v216 = vpop.f32.mrb[0].mxu0
    %v217 = vadd.f32 %v133, %v216
    %v218 = vpop.f32.mrb[0].mxu0
    %v219 = vpop.f32.mrb[0].mxu0
    %v220 = vadd.f32 %v133, %v219
    %v221 = vpop.f32.mrb[0].mxu0
    %222 = vdwg.mxu0
    %v223 = vmax.f32 %v217, 0.0
    %v224 = vmax.f32 %v220, 0.0
    %v225 = vld [vmem:[%s3] sm:$0xff]
    %v226 = vld [vmem:[%s3 + $0x8] sm:$0xff]
    %v227 = vld [vmem:[%s3 + $0x10] sm:$0xff]
    %v228 = vld [vmem:[%s3 + $0x18] sm:$0xff]
    %v229 = vld [vmem:[%s3 + $0x20] sm:$0xff]
    %v230 = vld [vmem:[%s3 + $0x28] sm:$0xff]
    %v231 = vld [vmem:[%s3 + $0x30] sm:$0xff]
    %v232 = vld [vmem:[%s3 + $0x38] sm:$0xff]
    %v233 = vld [vmem:[%s5 + $0x2] sm:$0x1]
    %v234 = vlaneseq
    %v235 = vshrl.u32 %v234, 7
    %v236 = vsub.s32 0, %v235
    %v237 = vrot.slane %v233, %v236
    %v239 = vsel %vm65, %v223, 0
    %v242 = vsel %vm65, %v224, 0
    %244 = vmatprep.subr.mxu0 0.0
    %245 = vmatpush1.msra.mxu0 %v225
    %246 = vmatprep.subr.mxu0 0.0
    %247 = vmatpush1.msra.mxu0 %v226
    %248 = vmatprep.subr.mxu0 0.0
    %249 = vmatpush1.msra.mxu0 %v227
    %250 = vmatprep.subr.mxu0 0.0
    %251 = vmatpush1.msra.mxu0 %v228
    %252 = vmatprep.subr.mxu0 0.0
    %253 = vmatpush1.msra.mxu0 %v229
    %254 = vmatprep.subr.mxu0 0.0
    %255 = vmatpush1.msra.mxu0 %v230
    %256 = vmatprep.subr.mxu0 0.0
    %257 = vmatpush1.msra.mxu0 %v231
    %258 = vmatprep.subr.mxu0 0.0
    %259 = vmatpush1.msra.mxu0 %v232
    %260 = vmatprep.subr.mxu0 0.0
    %261 = vmatpush1.msra.mxu0 0.0
    %262 = vmatprep.subr.mxu0 0.0
    %263 = vmatpush1.msra.mxu0 0.0
    %264 = vmatprep.subr.mxu0 0.0
    %265 = vmatpush1.msra.mxu0 0.0
    %266 = vmatprep.subr.mxu0 0.0
    %267 = vmatpush1.msra.mxu0 0.0
    %268 = vmatprep.subr.mxu0 0.0
    %269 = vmatpush1.msra.mxu0 0.0
    %270 = vmatprep.subr.mxu0 0.0
    %271 = vmatpush1.msra.mxu0 0.0
    %272 = vmatprep.subr.mxu0 0.0
    %273 = vmatpush1.msra.mxu0 0.0
    %274 = vmatprep.subr.mxu0 0.0
    %275 = vmatpush1.msra.mxu0 0.0
    %276 = vmatprep.subr.mxu0 0.0
    %277 = vmatpush1.msra.mxu0 0.0
    %278 = vmatprep.subr.mxu0 0.0
    %279 = vmatpush1.msra.mxu0 0.0
    %280 = vmatprep.subr.mxu0 0.0
    %281 = vmatpush1.msra.mxu0 0.0
    %282 = vmatprep.subr.mxu0 0.0
    %283 = vmatpush1.msra.mxu0 0.0
    %284 = vmatprep.subr.mxu0 0.0
    %285 = vmatpush1.msra.mxu0 0.0
    %286 = vmatprep.subr.mxu0 0.0
    %287 = vmatpush1.msra.mxu0 0.0
    %288 = vmatprep.subr.mxu0 0.0
    %289 = vmatpush1.msra.mxu0 0.0
    %290 = vmatprep.subr.mxu0 0.0
    %291 = vmatpush1.msra.mxu0 0.0
    %292 = vmatprep.subr.mxu0 0.0
    %293 = vmatpush1.msra.mxu0 0.0
    %294 = vmatprep.subr.mxu0 0.0
    %295 = vmatpush1.msra.mxu0 0.0
    %296 = vmatprep.subr.mxu0 0.0
    %297 = vmatpush1.msra.mxu0 0.0
    %298 = vmatprep.subr.mxu0 0.0
    %299 = vmatpush1.msra.mxu0 0.0
    %300 = vmatprep.subr.mxu0 0.0
    %301 = vmatpush1.msra.mxu0 0.0
    %302 = vmatprep.subr.mxu0 0.0
    %303 = vmatpush1.msra.mxu0 0.0
    %304 = vmatprep.subr.mxu0 0.0
    %305 = vmatpush1.msra.mxu0 0.0
    %306 = vmatprep.subr.mxu0 0.0
    %307 = vmatpush1.msra.mxu0 0.0
    %308 = vmatprep.mubr.f32.mxu0 0.0
    %309 = vmatmul.mubr.f32.gmra.mrb[0].mxu0 %v239
    %v310 = vpop.f32.mrb[0].mxu0
    %v311 = vadd.f32 %v237, %v310
    %v312 = vpop.f32.mrb[0].mxu0
    %313 = vmatprep.mubr.f32.mxu0 0.0
    %314 = vmatmul.mubr.f32.gmra.mrb[0].mxu0 %v242
    %v315 = vpop.f32.mrb[0].mxu0
    %v316 = vadd.f32 %v237, %v315
    %v317 = vpop.f32.mrb[0].mxu0
    %318 = vdwg.mxu0
    %v319 = vmax.f32 %v311, 0.0
    %v320 = vmax.f32 %v316, 0.0
    %v321 = vld [vmem:[%s4] sm:$0xff]
    %v322 = vld [vmem:[%s4 + $0x8] sm:$0x3]
    %v323 = vld [vmem:[%s5 + $0x3] sm:$0x1]
    %v324 = vlaneseq
    %v325 = vshrl.u32 %v324, 7
    %v326 = vsub.s32 0, %v325
    %v327 = vrot.slane %v323, %v326
    %vm328 = vcmask 80896
    %v330 = vsel %vm328, %v319, 0
    %v333 = vsel %vm328, %v320, 0
    %vm335 = vcmask 1041408
    %v337 = vsel %vm335, %v322, 0
    %339 = vmatprep.subr.mxu0 0.0
    %340 = vmatpush1.msra.mxu0 %v321
    %341 = vmatprep.subr.mxu0 0.0
    %342 = vmatpush1.msra.mxu0 %v337
    %343 = vmatprep.subr.mxu0 0.0
    %344 = vmatpush1.msra.mxu0 0.0
    %345 = vmatprep.subr.mxu0 0.0
    %346 = vmatpush1.msra.mxu0 0.0
    %347 = vmatprep.subr.mxu0 0.0
    %348 = vmatpush1.msra.mxu0 0.0
    %349 = vmatprep.subr.mxu0 0.0
    %350 = vmatpush1.msra.mxu0 0.0
    %351 = vmatprep.subr.mxu0 0.0
    %352 = vmatpush1.msra.mxu0 0.0
    %353 = vmatprep.subr.mxu0 0.0
    %354 = vmatpush1.msra.mxu0 0.0
    %355 = vmatprep.subr.mxu0 0.0
    %356 = vmatpush1.msra.mxu0 0.0
    %357 = vmatprep.subr.mxu0 0.0
    %358 = vmatpush1.msra.mxu0 0.0
    %359 = vmatprep.subr.mxu0 0.0
    %360 = vmatpush1.msra.mxu0 0.0
    %361 = vmatprep.subr.mxu0 0.0
    %362 = vmatpush1.msra.mxu0 0.0
    %363 = vmatprep.subr.mxu0 0.0
    %364 = vmatpush1.msra.mxu0 0.0
    %365 = vmatprep.subr.mxu0 0.0
    %366 = vmatpush1.msra.mxu0 0.0
    %367 = vmatprep.subr.mxu0 0.0
    %368 = vmatpush1.msra.mxu0 0.0
    %369 = vmatprep.subr.mxu0 0.0
    %370 = vmatpush1.msra.mxu0 0.0
    %371 = vmatprep.subr.mxu0 0.0
    %372 = vmatpush1.msra.mxu0 0.0
    %373 = vmatprep.subr.mxu0 0.0
    %374 = vmatpush1.msra.mxu0 0.0
    %375 = vmatprep.subr.mxu0 0.0
    %376 = vmatpush1.msra.mxu0 0.0
    %377 = vmatprep.subr.mxu0 0.0
    %378 = vmatpush1.msra.mxu0 0.0
    %379 = vmatprep.subr.mxu0 0.0
    %380 = vmatpush1.msra.mxu0 0.0
    %381 = vmatprep.subr.mxu0 0.0
    %382 = vmatpush1.msra.mxu0 0.0
    %383 = vmatprep.subr.mxu0 0.0
    %384 = vmatpush1.msra.mxu0 0.0
    %385 = vmatprep.subr.mxu0 0.0
    %386 = vmatpush1.msra.mxu0 0.0
    %387 = vmatprep.subr.mxu0 0.0
    %388 = vmatpush1.msra.mxu0 0.0
    %389 = vmatprep.subr.mxu0 0.0
    %390 = vmatpush1.msra.mxu0 0.0
    %391 = vmatprep.subr.mxu0 0.0
    %392 = vmatpush1.msra.mxu0 0.0
    %393 = vmatprep.subr.mxu0 0.0
    %394 = vmatpush1.msra.mxu0 0.0
    %395 = vmatprep.subr.mxu0 0.0
    %396 = vmatpush1.msra.mxu0 0.0
    %397 = vmatprep.subr.mxu0 0.0
    %398 = vmatpush1.msra.mxu0 0.0
    %399 = vmatprep.subr.mxu0 0.0
    %400 = vmatpush1.msra.mxu0 0.0
    %401 = vmatprep.subr.mxu0 0.0
    %402 = vmatpush1.msra.mxu0 0.0
    %403 = vmatprep.mubr.f32.mxu0 0.0
    %404 = vmatmul.mubr.f32.gmra.mrb[0].mxu0 %v330
    %v405 = vpop.f32.mrb[0].mxu0
    %v406 = vadd.f32 %v327, %v405
    %v407 = vpop.f32.mrb[0].mxu0
    %408 = vmatprep.mubr.f32.mxu0 0.0
    %409 = vmatmul.mubr.f32.gmra.mrb[0].mxu0 %v333
    %v410 = vpop.f32.mrb[0].mxu0
    %v411 = vadd.f32 %v327, %v410
    %v412 = vpop.f32.mrb[0].mxu0
    %413 = vdwg.mxu0
    %v414 = vmax.f32 %v406, 0.0
    %v415 = vmax.f32 %v411, 0.0
    %s416 = scalar_lea.vmem %s4, 16
    %v417 = vld [vmem:[%s416] sm:$0xff]
    %v418 = vld [vmem:[%s416 + $0x8] sm:$0x3]
    %v419 = vld [vmem:[%s5 + $0x4] sm:$0x1]
    %v420 = vlaneseq
    %v421 = vshrl.u32 %v420, 7
    %v422 = vsub.s32 0, %v421
    %v423 = vrot.slane %v419, %v422
    %v425 = vsel %vm328, %v414, 0
    %v428 = vsel %vm328, %v415, 0
    %v431 = vsel %vm335, %v418, 0
    %433 = vmatprep.subr.mxu0 0.0
    %434 = vmatpush1.msra.mxu0 %v417
    %435 = vmatprep.subr.mxu0 0.0
    %436 = vmatpush1.msra.mxu0 %v431
    %437 = vmatprep.subr.mxu0 0.0
    %438 = vmatpush1.msra.mxu0 0.0
    %439 = vmatprep.subr.mxu0 0.0
    %440 = vmatpush1.msra.mxu0 0.0
    %441 = vmatprep.subr.mxu0 0.0
    %442 = vmatpush1.msra.mxu0 0.0
    %443 = vmatprep.subr.mxu0 0.0
    %444 = vmatpush1.msra.mxu0 0.0
    %445 = vmatprep.subr.mxu0 0.0
    %446 = vmatpush1.msra.mxu0 0.0
    %447 = vmatprep.subr.mxu0 0.0
    %448 = vmatpush1.msra.mxu0 0.0
    %449 = vmatprep.subr.mxu0 0.0
    %450 = vmatpush1.msra.mxu0 0.0
    %451 = vmatprep.subr.mxu0 0.0
    %452 = vmatpush1.msra.mxu0 0.0
    %453 = vmatprep.subr.mxu0 0.0
    %454 = vmatpush1.msra.mxu0 0.0
    %455 = vmatprep.subr.mxu0 0.0
    %456 = vmatpush1.msra.mxu0 0.0
    %457 = vmatprep.subr.mxu0 0.0
    %458 = vmatpush1.msra.mxu0 0.0
    %459 = vmatprep.subr.mxu0 0.0
    %460 = vmatpush1.msra.mxu0 0.0
    %461 = vmatprep.subr.mxu0 0.0
    %462 = vmatpush1.msra.mxu0 0.0
    %463 = vmatprep.subr.mxu0 0.0
    %464 = vmatpush1.msra.mxu0 0.0
    %465 = vmatprep.subr.mxu0 0.0
    %466 = vmatpush1.msra.mxu0 0.0
    %467 = vmatprep.subr.mxu0 0.0
    %468 = vmatpush1.msra.mxu0 0.0
    %469 = vmatprep.subr.mxu0 0.0
    %470 = vmatpush1.msra.mxu0 0.0
    %471 = vmatprep.subr.mxu0 0.0
    %472 = vmatpush1.msra.mxu0 0.0
    %473 = vmatprep.subr.mxu0 0.0
    %474 = vmatpush1.msra.mxu0 0.0
    %475 = vmatprep.subr.mxu0 0.0
    %476 = vmatpush1.msra.mxu0 0.0
    %477 = vmatprep.subr.mxu0 0.0
    %478 = vmatpush1.msra.mxu0 0.0
    %479 = vmatprep.subr.mxu0 0.0
    %480 = vmatpush1.msra.mxu0 0.0
    %481 = vmatprep.subr.mxu0 0.0
    %482 = vmatpush1.msra.mxu0 0.0
    %483 = vmatprep.subr.mxu0 0.0
    %484 = vmatpush1.msra.mxu0 0.0
    %485 = vmatprep.subr.mxu0 0.0
    %486 = vmatpush1.msra.mxu0 0.0
    %487 = vmatprep.subr.mxu0 0.0
    %488 = vmatpush1.msra.mxu0 0.0
    %489 = vmatprep.subr.mxu0 0.0
    %490 = vmatpush1.msra.mxu0 0.0
    %491 = vmatprep.subr.mxu0 0.0
    %492 = vmatpush1.msra.mxu0 0.0
    %493 = vmatprep.subr.mxu0 0.0
    %494 = vmatpush1.msra.mxu0 0.0
    %495 = vmatprep.subr.mxu0 0.0
    %496 = vmatpush1.msra.mxu0 0.0
    %497 = vmatprep.mubr.f32.mxu0 0.0
    %498 = vmatmul.mubr.f32.gmra.mrb[0].mxu0 %v425
    %v499 = vpop.f32.mrb[0].mxu0
    %v500 = vadd.f32 %v423, %v499
    %v501 = vpop.f32.mrb[0].mxu0
    %502 = vmatprep.mubr.f32.mxu0 0.0
    %503 = vmatmul.mubr.f32.gmra.mrb[0].mxu0 %v428
    %v504 = vpop.f32.mrb[0].mxu0
    %v505 = vadd.f32 %v423, %v504
    %v506 = vpop.f32.mrb[0].mxu0
    %507 = vdwg.mxu0
    %v508 = vmax.f32 %v500, 0.0
    %v509 = vmax.f32 %v505, 0.0
    %s510 = scalar_lea.vmem %s4, 32
    %v511 = vld [vmem:[%s510] sm:$0xff]
    %v512 = vld [vmem:[%s510 + $0x8] sm:$0x3]
    %v513 = vld [vmem:[%s5 + $0x5] sm:$0x1]
    %v514 = vlaneseq
    %v515 = vshrl.u32 %v514, 7
    %v516 = vsub.s32 0, %v515
    %v517 = vrot.slane %v513, %v516
    %v519 = vsel %vm328, %v508, 0
    %v522 = vsel %vm328, %v509, 0
    %v525 = vsel %vm335, %v512, 0
    %527 = vmatprep.subr.mxu0 0.0
    %528 = vmatpush1.msra.mxu0 %v511
    %529 = vmatprep.subr.mxu0 0.0
    %530 = vmatpush1.msra.mxu0 %v525
    %531 = vmatprep.subr.mxu0 0.0
    %532 = vmatpush1.msra.mxu0 0.0
    %533 = vmatprep.subr.mxu0 0.0
    %534 = vmatpush1.msra.mxu0 0.0
    %535 = vmatprep.subr.mxu0 0.0
    %536 = vmatpush1.msra.mxu0 0.0
    %537 = vmatprep.subr.mxu0 0.0
    %538 = vmatpush1.msra.mxu0 0.0
    %539 = vmatprep.subr.mxu0 0.0
    %540 = vmatpush1.msra.mxu0 0.0
    %541 = vmatprep.subr.mxu0 0.0
    %542 = vmatpush1.msra.mxu0 0.0
    %543 = vmatprep.subr.mxu0 0.0
    %544 = vmatpush1.msra.mxu0 0.0
    %545 = vmatprep.subr.mxu0 0.0
    %546 = vmatpush1.msra.mxu0 0.0
    %547 = vmatprep.subr.mxu0 0.0
    %548 = vmatpush1.msra.mxu0 0.0
    %549 = vmatprep.subr.mxu0 0.0
    %550 = vmatpush1.msra.mxu0 0.0
    %551 = vmatprep.subr.mxu0 0.0
    %552 = vmatpush1.msra.mxu0 0.0
    %553 = vmatprep.subr.mxu0 0.0
    %554 = vmatpush1.msra.mxu0 0.0
    %555 = vmatprep.subr.mxu0 0.0
    %556 = vmatpush1.msra.mxu0 0.0
    %557 = vmatprep.subr.mxu0 0.0
    %558 = vmatpush1.msra.mxu0 0.0
    %559 = vmatprep.subr.mxu0 0.0
    %560 = vmatpush1.msra.mxu0 0.0
    %561 = vmatprep.subr.mxu0 0.0
    %562 = vmatpush1.msra.mxu0 0.0
    %563 = vmatprep.subr.mxu0 0.0
    %564 = vmatpush1.msra.mxu0 0.0
    %565 = vmatprep.subr.mxu0 0.0
    %566 = vmatpush1.msra.mxu0 0.0
    %567 = vmatprep.subr.mxu0 0.0
    %568 = vmatpush1.msra.mxu0 0.0
    %569 = vmatprep.subr.mxu0 0.0
    %570 = vmatpush1.msra.mxu0 0.0
    %571 = vmatprep.subr.mxu0 0.0
    %572 = vmatpush1.msra.mxu0 0.0
    %573 = vmatprep.subr.mxu0 0.0
    %574 = vmatpush1.msra.mxu0 0.0
    %575 = vmatprep.subr.mxu0 0.0
    %576 = vmatpush1.msra.mxu0 0.0
    %577 = vmatprep.subr.mxu0 0.0
    %578 = vmatpush1.msra.mxu0 0.0
    %579 = vmatprep.subr.mxu0 0.0
    %580 = vmatpush1.msra.mxu0 0.0
    %581 = vmatprep.subr.mxu0 0.0
    %582 = vmatpush1.msra.mxu0 0.0
    %583 = vmatprep.subr.mxu0 0.0
    %584 = vmatpush1.msra.mxu0 0.0
    %585 = vmatprep.subr.mxu0 0.0
    %586 = vmatpush1.msra.mxu0 0.0
    %587 = vmatprep.subr.mxu0 0.0
    %588 = vmatpush1.msra.mxu0 0.0
    %589 = vmatprep.subr.mxu0 0.0
    %590 = vmatpush1.msra.mxu0 0.0
    %591 = vmatprep.mubr.f32.mxu0 0.0
    %592 = vmatmul.mubr.f32.gmra.mrb[0].mxu0 %v519
    %v593 = vpop.f32.mrb[0].mxu0
    %v594 = vadd.f32 %v517, %v593
    %v595 = vpop.f32.mrb[0].mxu0
    %596 = vmatprep.mubr.f32.mxu0 0.0
    %597 = vmatmul.mubr.f32.gmra.mrb[0].mxu0 %v522
    %v598 = vpop.f32.mrb[0].mxu0
    %v599 = vadd.f32 %v517, %v598
    %v600 = vpop.f32.mrb[0].mxu0
    %601 = vdwg.mxu0
    %v602 = vmax.f32 %v594, 0.0
    %v603 = vmax.f32 %v599, 0.0
    %s604 = scalar_lea.vmem %s4, 48
    %v605 = vld [vmem:[%s604] sm:$0xff]
    %v606 = vld [vmem:[%s604 + $0x8] sm:$0x3]
    %v607 = vld [vmem:[%s5 + $0x6] sm:$0x1]
    %v608 = vlaneseq
    %v609 = vshrl.u32 %v608, 7
    %v610 = vsub.s32 0, %v609
    %v611 = vrot.slane %v607, %v610
    %v613 = vsel %vm328, %v602, 0
    %v616 = vsel %vm328, %v603, 0
    %v619 = vsel %vm335, %v606, 0
    %621 = vmatprep.subr.mxu0 0.0
    %622 = vmatpush1.msra.mxu0 %v605
    %623 = vmatprep.subr.mxu0 0.0
    %624 = vmatpush1.msra.mxu0 %v619
    %625 = vmatprep.subr.mxu0 0.0
    %626 = vmatpush1.msra.mxu0 0.0
    %627 = vmatprep.subr.mxu0 0.0
    %628 = vmatpush1.msra.mxu0 0.0
    %629 = vmatprep.subr.mxu0 0.0
    %630 = vmatpush1.msra.mxu0 0.0
    %631 = vmatprep.subr.mxu0 0.0
    %632 = vmatpush1.msra.mxu0 0.0
    %633 = vmatprep.subr.mxu0 0.0
    %634 = vmatpush1.msra.mxu0 0.0
    %635 = vmatprep.subr.mxu0 0.0
    %636 = vmatpush1.msra.mxu0 0.0
    %637 = vmatprep.subr.mxu0 0.0
    %638 = vmatpush1.msra.mxu0 0.0
    %639 = vmatprep.subr.mxu0 0.0
    %640 = vmatpush1.msra.mxu0 0.0
    %641 = vmatprep.subr.mxu0 0.0
    %642 = vmatpush1.msra.mxu0 0.0
    %643 = vmatprep.subr.mxu0 0.0
    %644 = vmatpush1.msra.mxu0 0.0
    %645 = vmatprep.subr.mxu0 0.0
    %646 = vmatpush1.msra.mxu0 0.0
    %647 = vmatprep.subr.mxu0 0.0
    %648 = vmatpush1.msra.mxu0 0.0
    %649 = vmatprep.subr.mxu0 0.0
    %650 = vmatpush1.msra.mxu0 0.0
    %651 = vmatprep.subr.mxu0 0.0
    %652 = vmatpush1.msra.mxu0 0.0
    %653 = vmatprep.subr.mxu0 0.0
    %654 = vmatpush1.msra.mxu0 0.0
    %655 = vmatprep.subr.mxu0 0.0
    %656 = vmatpush1.msra.mxu0 0.0
    %657 = vmatprep.subr.mxu0 0.0
    %658 = vmatpush1.msra.mxu0 0.0
    %659 = vmatprep.subr.mxu0 0.0
    %660 = vmatpush1.msra.mxu0 0.0
    %661 = vmatprep.subr.mxu0 0.0
    %662 = vmatpush1.msra.mxu0 0.0
    %663 = vmatprep.subr.mxu0 0.0
    %664 = vmatpush1.msra.mxu0 0.0
    %665 = vmatprep.subr.mxu0 0.0
    %666 = vmatpush1.msra.mxu0 0.0
    %667 = vmatprep.subr.mxu0 0.0
    %668 = vmatpush1.msra.mxu0 0.0
    %669 = vmatprep.subr.mxu0 0.0
    %670 = vmatpush1.msra.mxu0 0.0
    %671 = vmatprep.subr.mxu0 0.0
    %672 = vmatpush1.msra.mxu0 0.0
    %673 = vmatprep.subr.mxu0 0.0
    %674 = vmatpush1.msra.mxu0 0.0
    %675 = vmatprep.subr.mxu0 0.0
    %676 = vmatpush1.msra.mxu0 0.0
    %677 = vmatprep.subr.mxu0 0.0
    %678 = vmatpush1.msra.mxu0 0.0
    %679 = vmatprep.subr.mxu0 0.0
    %680 = vmatpush1.msra.mxu0 0.0
    %681 = vmatprep.subr.mxu0 0.0
    %682 = vmatpush1.msra.mxu0 0.0
    %683 = vmatprep.subr.mxu0 0.0
    %684 = vmatpush1.msra.mxu0 0.0
    %685 = vmatprep.mubr.f32.mxu0 0.0
    %686 = vmatmul.mubr.f32.gmra.mrb[0].mxu0 %v613
    %v687 = vpop.f32.mrb[0].mxu0
    %v688 = vadd.f32 %v611, %v687
    %v689 = vpop.f32.mrb[0].mxu0
    %690 = vmatprep.mubr.f32.mxu0 0.0
    %691 = vmatmul.mubr.f32.gmra.mrb[0].mxu0 %v616
    %v692 = vpop.f32.mrb[0].mxu0
    %v693 = vadd.f32 %v611, %v692
    %v694 = vpop.f32.mrb[0].mxu0
    %695 = vdwg.mxu0
    %v696 = vsel %vm328, %v688, -inf
    %697 = vmax.xlane.f32.xlu0 %v696
    %v698 = vpop.xlane.xlu0 %697
    %v699 = vsel %vm328, %v693, -inf
    %700 = vmax.xlane.f32.xlu0 %v699
    %v701 = vpop.xlane.xlu0 %700
    %v702 = vsub.f32 %v688, %v698
    %v703 = vsub.f32 %v693, %v701
    %v704 = vmul.f32 %v702, 1.442695
    %v705 = vpow.pop %v704
    %v706 = vmul.f32 %v703, 1.442695
    %v707 = vpow.pop %v706
    %v708 = vsel %vm328, %v705, 0.0
    %709 = vadd.xlane.f32.xlu0 %v708
    %v710 = vpop.xlane.xlu0 %709
    %v711 = vsel %vm328, %v707, 0.0
    %712 = vadd.xlane.f32.xlu0 %v711
    %v713 = vpop.xlane.xlu0 %712
    %v714 = vlog2.pop %v710
    %v715 = vmul.f32 %v714, 0.6931472
    %v716 = vlog2.pop %v713
    %v717 = vmul.f32 %v716, 0.6931472
    %v718 = vsub.f32 %v702, %v715
    %v719 = vsub.f32 %v703, %v717
    %720 = vst.msk [vmem:[#allocation2] sm:$0xff] %vm328, %v718
    %721 = vst.msk [vmem:[#allocation2 + $0x8] sm:$0xff] %vm328, %v719
    // Predicated region
    $region26: #{tpu_custom_call.1} parent=1 // pred_check
      _
    $region27: #{tpu_custom_call.1} parent=1 // pred_check_branch
      %723 = sbr.rel (0) target = $region29
    $region28: #{tpu_custom_call.1} parent=1 // pred_region
      %s725 = ssub.s32 256, 128
      %726 = vsyncadd [#allocation3], %s725
      %s727 = sshll.u32 [#allocation2], 4
      %s728 = int_to_ptr.vmem [resolvable:$true] %s727
      %733 = dma.vmem_to_hbm [thread:$0]  %s728, 128, %s6, [#allocation3], 128, 128, 8
    $region29: #{tpu_custom_call.1} parent=1 // pred_fallthru
      _
    // Predicated region
    $region30: #{tpu_custom_call.1} parent=1 // pred_check
      _
    $region31: #{tpu_custom_call.1} parent=1 // pred_check_branch
      %735 = sbr.rel (0) target = $region33
    $region32: #{tpu_custom_call.1} parent=1 // pred_region
      %736 = dma.done [#allocation3], 256
    $region33: #{tpu_custom_call.1} parent=1 // pred_fallthru
      _
    %737 = vsyncpa [#allocation3], 1

</llo_original>
